<compile_context>
chip_gen: v6e
topology: v6e:2x2x1
jax: 0.10.0
libtpu: 0.0.40
codegen_flags: <defaults>
</compile_context>

<pallas_src>
import numpy as np
import jax
import jax.numpy as jnp
from jax import lax
from jax.experimental import pallas as pl
from jax.experimental.pallas import tpu as pltpu


def _round_up(n: int, m: int) -> int:
    return ((n + m - 1) // m) * m


def _ensemble_kernel(x_ref, w_ref, b_ref, wstd_ref, out_ref):
    # x_ref:    [TB, F]  input batch tile (only touched by the matmul)
    # w_ref:    [M, F]   full weights, grid-invariant (resident in VMEM)
    # b_ref:    [M, 1]   f32 biases
    # wstd_ref: [M, 1]   f32 sqrt(sum_f weight_uncertainty^2)  (hoisted to host)
    # out_ref:  [2, TB]  f32: row 0 = mean probability, row 1 = total uncertainty
    x = x_ref[...]
    w = w_ref[...]
    b = b_ref[...]
    wstd = wstd_ref[...]

    n_models = w.shape[0]

    # logits [M, TB]: contract over features; batch lands on the lane axis so
    # the ensemble reductions below are cheap sublane reductions over full vregs.
    logits = lax.dot_general(
        w, x, (((1,), (1,)), ((), ())),
        preferred_element_type=jnp.float32) + b
    probs = jax.nn.sigmoid(logits)                              # [M, TB] f32

    mean_prob = jnp.mean(probs, axis=0, keepdims=True)          # [1, TB]

    # Unbiased (ddof=1) variance over models, matching torch.std's default.
    # NOTE: n_models == 1 yields nan here, exactly like torch.std.
    centered = probs - mean_prob
    var_prob = jnp.sum(centered * centered, axis=0, keepdims=True) / (n_models - 1)

    # Per-model uncertainty: sigmoid'(z) * sqrt(sum_f wu^2), then mean over models.
    sigmoid_grads = probs * (1.0 - probs)                       # [M, TB]
    unc_mean = jnp.mean(sigmoid_grads * wstd, axis=0, keepdims=True)  # [1, TB]

    total_unc = jnp.sqrt(var_prob + unc_mean * unc_mean)        # [1, TB]

    out_ref[...] = jnp.concatenate([mean_prob, total_unc], axis=0)   # [2, TB]


def _vmem_budget_bytes() -> int:
    """Per-generation scratch-VMEM budget (leave compiler headroom)."""
    try:
        cap = int(pltpu.get_tpu_info().vmem_capacity_bytes)
    except Exception:
        cap = 64 << 20
    if cap >= (100 << 20):       # v5e / v6e: 128 MiB physical VMEM
        return 96 << 20
    return 48 << 20              # v7x: 64 MiB per TensorCore


def bayesian_ensemble_forward(x, weights, biases, weight_uncertainty, *,
                              block_b: int | None = None):
    """x: [B, F]; weights/weight_uncertainty: [M, F]; biases: [M].
    Returns (mean_prob [B], total_uncertainty [B]) as float32."""
    B, F = x.shape
    M = weights.shape[0]
    itemsize = jnp.dtype(x.dtype).itemsize

    # No host-side weights.T and no host-side pad of x: the kernel contracts
    # over F with dot_general and the ragged tail is handled by Pallas' partial
    # block reads / dropped out-of-range output writes.
    w = weights.astype(x.dtype)
    b32 = biases.astype(jnp.float32).reshape(M, 1)
    # Hoist the x-independent weight-uncertainty reduction out of the kernel.
    wstd = jnp.sqrt(
        jnp.sum(weight_uncertainty.astype(jnp.float32) ** 2, axis=1, keepdims=True))

    # --- VMEM-aware tile sizing (accounts for (8,128) layout padding) -------
    lane_f = _round_up(F, 128)           # x tile last dim is lane-padded to 128
    m_pad = _round_up(M, 8)              # ensemble axis sublane padding
    per_row_bytes = (
        2 * lane_f * itemsize            # x tile, double-buffered, lane-padded
        + 2 * 8 * 4                      # fused (2, tb) f32 output, 2-deep, sublane-padded
        + 6 * m_pad * 4)                 # [M, tb] f32 intermediates (probs, centered, ...)
    fixed_bytes = (m_pad * lane_f * itemsize   # resident weights
                   + 2 * m_pad * 128 * 4)      # bias + wstd ([M,1] lane-padded)

    vmem_budget = _vmem_budget_bytes()
    tb_cap = max(128, ((vmem_budget - fixed_bytes) // per_row_bytes) // 128 * 128)
    if block_b is None:
        block_b = 8192                   # grid-overhead-bound: go big by default
    tb_cap = min(tb_cap, _round_up(block_b, 128))

    if B <= tb_cap:
        tb = B                           # single block: block dims == array dims
    else:
        tb = tb_cap                      # multiple of 128 (lane- & sublane-legal)
    grid = (pl.cdiv(B, tb),)

    vmem_est = fixed_bytes + tb * per_row_bytes
    vmem_limit = int(min(max(int(vmem_est * 1.25) + (2 << 20), 16 << 20),
                         vmem_budget))

    stats = pl.pallas_call(
        _ensemble_kernel,
        out_shape=jax.ShapeDtypeStruct((2, B), jnp.float32),
        grid=grid,
        in_specs=[
            pl.BlockSpec((tb, F), lambda i: (i, 0)),   # x: tiled over batch
            pl.BlockSpec((M, F), lambda i: (0, 0)),    # weights: grid-invariant
            pl.BlockSpec((M, 1), lambda i: (0, 0)),    # biases: grid-invariant
            pl.BlockSpec((M, 1), lambda i: (0, 0)),    # sqrt(sum wu^2): grid-invariant
        ],
        out_specs=pl.BlockSpec((2, tb), lambda i: (0, i)),   # fused lane-dense output
        compiler_params=pltpu.CompilerParams(
            dimension_semantics=("parallel",),         # shard batch across TCs (v7x)
            vmem_limit_bytes=vmem_limit,
        ),
    )(x, w, b32, wstd)

    return stats[0], stats[1]


def init_params(key, n_models, n_features, dtype=jnp.float32):
    """Deterministic re-implementation of _initialize_ensemble (same structure,
    JAX RNG instead of torch RNG)."""
    kw, kb = jax.random.split(key)
    base_w = jax.random.normal(kw, (n_models, n_features), dtype=jnp.float32) * 1.0
    base_b = jax.random.normal(kb, (n_models,), dtype=jnp.float32) * 2.0

    idx = np.arange(n_models, dtype=np.float32)
    variation = 0.1 + idx / n_models * 0.2            # [M]
    w = base_w * (1.0 + variation)[:, None]
    b = base_b * (1.0 + variation)

    # feature-doubling pattern depending on i % 5
    mult = np.ones((n_models, n_features), dtype=np.float32)
    mod = np.arange(n_models) % 5
    mult[mod == 0, 1] = 2.0
    mult[mod == 0, 5] = 2.0
    mult[mod == 1, 2] = 2.0
    mult[mod == 2, 3] = 2.0
    mult[mod == 3, 4] = 2.0
    w = w * jnp.asarray(mult)

    wu = jnp.full((n_models, n_features), 0.1, dtype=jnp.float32)
    bu = jnp.full((n_models,), 0.1, dtype=jnp.float32)
    return (w.astype(dtype), b.astype(dtype), wu.astype(dtype), bu.astype(dtype))


def _reference_forward(x, weights, biases, weight_uncertainty):
    logits = weights.astype(jnp.float32) @ x.astype(jnp.float32).T \
        + biases.astype(jnp.float32)[:, None]         # [M, B]
    probs = jax.nn.sigmoid(logits)
    mean_prob = probs.mean(axis=0)
    std_prob = jnp.std(probs, axis=0, ddof=1)
    sg = probs * (1 - probs)
    wvar = jnp.sum(weight_uncertainty.astype(jnp.float32) ** 2, axis=1, keepdims=True)
    unc = sg * jnp.sqrt(wvar)
    total = jnp.sqrt(std_prob ** 2 + unc.mean(axis=0) ** 2)
    return mean_prob, total


def _check(batch, n_models, n_features, key, dtype=jnp.float32, block_b=None):
    k_params, k_x = jax.random.split(key)
    weights, biases, weight_unc, _ = init_params(k_params, n_models, n_features, dtype)
    x = jax.random.normal(k_x, (batch, n_features), dtype=dtype)

    mean_prob, total_unc = bayesian_ensemble_forward(
        x, weights, biases, weight_unc, block_b=block_b)
    jax.block_until_ready((mean_prob, total_unc))

    ref_mean, ref_unc = _reference_forward(x, weights, biases, weight_unc)
    np.testing.assert_allclose(np.asarray(mean_prob), np.asarray(ref_mean),
                               rtol=1e-5, atol=1e-5)
    np.testing.assert_allclose(np.asarray(total_unc), np.asarray(ref_unc),
                               rtol=1e-5, atol=1e-5)


if __name__ == "__main__":
    key = jax.random.PRNGKey(0)
    k1, k2, k3 = jax.random.split(key, 3)

    # Small shapes consistent with the module's forward: x [batch, n_features].
    _check(batch=8, n_models=16, n_features=32, key=k1)
    # Multi-block grid, batch an exact multiple of the tile.
    _check(batch=640, n_models=16, n_features=32, key=k2, block_b=256)
    # Ragged last tile (batch NOT a multiple of tb): locks in the no-pad path
    # where out-of-range x rows are garbage but their output columns are dropped.
    _check(batch=700, n_models=16, n_features=32, key=k3, block_b=256)

    print("KERNEL_OK")
</pallas_src>

<mosaic_0001>
module attributes {stable_mosaic.version = 11 : i64} {
  func.func @_ensemble_kernel(%arg0: i32, %arg1: memref<8x32xf32, #tpu.memory_space<vmem>>, %arg2: memref<16x32xf32, #tpu.memory_space<vmem>>, %arg3: memref<16x1xf32, #tpu.memory_space<vmem>>, %arg4: memref<16x1xf32, #tpu.memory_space<vmem>>, %arg5: memref<2x8xf32, #tpu.memory_space<vmem>>) attributes {dimension_semantics = [#tpu.dimension_semantics<parallel>], iteration_bounds = array<i64: 1>, scalar_prefetch = 0 : i64, scratch_operands = 0 : i64, tpu.core_type = #tpu.core_type<tc>, window_params = [{transform_indices = @transform_0, window_bounds = array<i64: 8, 32>}, {pipeline_mode = #tpu.pipeline_mode<synchronous>, transform_indices = @transform_1, window_bounds = array<i64: 16, 32>}, {pipeline_mode = #tpu.pipeline_mode<synchronous>, transform_indices = @transform_2, window_bounds = array<i64: 16, 1>}, {pipeline_mode = #tpu.pipeline_mode<synchronous>, transform_indices = @transform_3, window_bounds = array<i64: 16, 1>}, {transform_indices = @transform_4, window_bounds = array<i64: 2, 8>}]} {
    %c0 = arith.constant 0 : index
    %c0_0 = arith.constant 0 : index
    %0 = vector.load %arg1[%c0, %c0_0] : memref<8x32xf32, #tpu.memory_space<vmem>>, vector<8x32xf32>
    %c0_1 = arith.constant 0 : index
    %c0_2 = arith.constant 0 : index
    %1 = vector.load %arg2[%c0_1, %c0_2] : memref<16x32xf32, #tpu.memory_space<vmem>>, vector<16x32xf32>
    %c0_3 = arith.constant 0 : index
    %c0_4 = arith.constant 0 : index
    %2 = vector.load %arg3[%c0_3, %c0_4] : memref<16x1xf32, #tpu.memory_space<vmem>>, vector<16x1xf32>
    %c0_5 = arith.constant 0 : index
    %c0_6 = arith.constant 0 : index
    %3 = vector.load %arg4[%c0_5, %c0_6] : memref<16x1xf32, #tpu.memory_space<vmem>>, vector<16x1xf32>
    %cst = arith.constant dense<0.000000e+00> : vector<16x8xf32>
    %4 = tpu.matmul %1, %0, %cst {dimension_numbers = #tpu.dot_dimension_numbers<[1], [1], [0], [0], [0, 0, 1, 0], [], []>} : vector<16x32xf32>, vector<8x32xf32>, vector<16x8xf32> -> vector<16x8xf32>
    %5 = vector.broadcast %2 : vector<16x1xf32> to vector<16x8xf32>
    %6 = arith.addf %4, %5 : vector<16x8xf32>
    %7 = arith.negf %6 : vector<16x8xf32>
    %8 = math.exp %7 : vector<16x8xf32>
    %cst_7 = arith.constant 1.000000e+00 : f32
    %9 = vector.broadcast %cst_7 : f32 to vector<16x8xf32>
    %10 = arith.addf %9, %8 : vector<16x8xf32>
    %11 = arith.divf %9, %10 : vector<16x8xf32>
    %cst_8 = arith.constant dense<0.000000e+00> : vector<8xf32>
    %12 = vector.multi_reduction <add>, %11, %cst_8 [0] : vector<16x8xf32> to vector<8xf32>
    %13 = vector.shape_cast %12 : vector<8xf32> to vector<1x8xf32>
    %cst_9 = arith.constant 1.600000e+01 : f32
    %14 = vector.broadcast %cst_9 : f32 to vector<1x8xf32>
    %15 = arith.divf %13, %14 : vector<1x8xf32>
    %16 = vector.broadcast %15 : vector<1x8xf32> to vector<16x8xf32>
    %17 = arith.subf %11, %16 : vector<16x8xf32>
    %18 = arith.mulf %17, %17 : vector<16x8xf32>
    %cst_10 = arith.constant dense<0.000000e+00> : vector<8xf32>
    %19 = vector.multi_reduction <add>, %18, %cst_10 [0] : vector<16x8xf32> to vector<8xf32>
    %20 = vector.shape_cast %19 : vector<8xf32> to vector<1x8xf32>
    %cst_11 = arith.constant 1.500000e+01 : f32
    %21 = vector.broadcast %cst_11 : f32 to vector<1x8xf32>
    %22 = arith.divf %20, %21 : vector<1x8xf32>
    %cst_12 = arith.constant 1.000000e+00 : f32
    %23 = vector.broadcast %cst_12 : f32 to vector<16x8xf32>
    %24 = arith.subf %23, %11 : vector<16x8xf32>
    %25 = arith.mulf %11, %24 : vector<16x8xf32>
    %26 = vector.broadcast %3 : vector<16x1xf32> to vector<16x8xf32>
    %27 = arith.mulf %25, %26 : vector<16x8xf32>
    %cst_13 = arith.constant dense<0.000000e+00> : vector<8xf32>
    %28 = vector.multi_reduction <add>, %27, %cst_13 [0] : vector<16x8xf32> to vector<8xf32>
    %29 = vector.shape_cast %28 : vector<8xf32> to vector<1x8xf32>
    %cst_14 = arith.constant 1.600000e+01 : f32
    %30 = vector.broadcast %cst_14 : f32 to vector<1x8xf32>
    %31 = arith.divf %29, %30 : vector<1x8xf32>
    %32 = arith.mulf %31, %31 : vector<1x8xf32>
    %33 = arith.addf %22, %32 : vector<1x8xf32>
    %34 = math.sqrt %33 : vector<1x8xf32>
    %35 = tpu.concatenate %15, %34 in 0 : vector<1x8xf32>, vector<1x8xf32> -> vector<2x8xf32>
    %c0_15 = arith.constant 0 : index
    %c0_16 = arith.constant 0 : index
    %36 = vector.load %arg5[%c0_15, %c0_16] : memref<2x8xf32, #tpu.memory_space<vmem>>, vector<2x8xf32>
    tpu.vector_store %arg5[%c0_15, %c0_16], %35 {strides = array<i32>} : memref<2x8xf32, #tpu.memory_space<vmem>>, vector<2x8xf32>,
    return
  }
  func.func @transform_0(%arg0: i32) -> (i32, i32) {
    %c0_i32 = arith.constant 0 : i32
    %c0_i32_0 = arith.constant 0 : i32
    return %arg0, %c0_i32 : i32, i32
  }
  func.func @transform_1(%arg0: i32) -> (i32, i32) {
    %c0_i32 = arith.constant 0 : i32
    %c0_i32_0 = arith.constant 0 : i32
    %c0_i32_1 = arith.constant 0 : i32
    return %c0_i32, %c0_i32_0 : i32, i32
  }
  func.func @transform_2(%arg0: i32) -> (i32, i32) {
    %c0_i32 = arith.constant 0 : i32
    %c0_i32_0 = arith.constant 0 : i32
    %c0_i32_1 = arith.constant 0 : i32
    return %c0_i32, %c0_i32_0 : i32, i32
  }
  func.func @transform_3(%arg0: i32) -> (i32, i32) {
    %c0_i32 = arith.constant 0 : i32
    %c0_i32_0 = arith.constant 0 : i32
    %c0_i32_1 = arith.constant 0 : i32
    return %c0_i32, %c0_i32_0 : i32, i32
  }
  func.func @transform_4(%arg0: i32) -> (i32, i32) {
    %c0_i32 = arith.constant 0 : i32
    %c0_i32_0 = arith.constant 0 : i32
    return %c0_i32, %arg0 : i32, i32
  }
}

</mosaic_0001>

<llo_original>
// kernel: tpu_custom_call.1
$region0: #{tpu_custom_call.1}
  #allocation0 [shape = 'u32[]', space=smem, size = 0x4, offset = 0x4, fixed_abs, tag = 'smem constant byte address 0x4 - core index']
  #allocation1 [shape = 'u32[144,128]{1,0:T(1,128)}', space=vmem, size = 0x12000, scoped, tag = 'internal scratch']
  %s0 = inlined_call_operand.vmem [shape: f32[8,32], index: 0, kind: input, shape index: {}]
  %s1 = inlined_call_operand.vmem [shape: f32[16,32], index: 1, kind: input, shape index: {}]
  %s2 = inlined_call_operand.vmem [shape: f32[16,1], index: 2, kind: input, shape index: {}]
  %s3 = inlined_call_operand.vmem [shape: f32[16,1], index: 3, kind: input, shape index: {}]
  %s4 = inlined_call_operand.hbm [shape: f32[2,8], index: 4, kind: output, shape index: {}]
  %s5 = sld [smem:[#allocation0]]
  $region26: #{tpu_custom_call.1} parent=0
    _
  %s7 = ssub.s32 1, %s5
  %s8 = scalar_select 0, %s7, %s5
  $region1: #{tpu_custom_call.1} parent=0
    #allocation2 [shape = 'u8[1024]{0}', space=vmem, size = 0x400, scoped, tag = 'output window, operand 0, single buffered']
    #allocation3 [shape = 's32[1]{0}', space=sflag, size = 0x4, scoped, tag = 'scoped memory for tpu_custom_call.1']
    %9 = vsyncpa [#allocation3], 0
    // Predicated region
    $region2: #{tpu_custom_call.1} parent=1 // pred_check
      _
    $region3: #{tpu_custom_call.1} parent=1 // pred_check_branch
      %11 = sbr.rel (0) target = $region5
    $region4: #{tpu_custom_call.1} parent=1 // pred_region
      _
    $region5: #{tpu_custom_call.1} parent=1 // pred_fallthru
      _
    // Predicated region
    $region6: #{tpu_custom_call.1} parent=1 // pred_check
      _
    $region7: #{tpu_custom_call.1} parent=1 // pred_check_branch
      %13 = sbr.rel (0) target = $region9
    $region8: #{tpu_custom_call.1} parent=1 // pred_region
      _
    $region9: #{tpu_custom_call.1} parent=1 // pred_fallthru
      _
    // Predicated region
    $region10: #{tpu_custom_call.1} parent=1 // pred_check
      _
    $region11: #{tpu_custom_call.1} parent=1 // pred_check_branch
      %15 = sbr.rel (0) target = $region13
    $region12: #{tpu_custom_call.1} parent=1 // pred_region
      _
    $region13: #{tpu_custom_call.1} parent=1 // pred_fallthru
      _
    // Predicated region
    $region14: #{tpu_custom_call.1} parent=1 // pred_check
      _
    $region15: #{tpu_custom_call.1} parent=1 // pred_check_branch
      %17 = sbr.rel (0) target = $region17
    $region16: #{tpu_custom_call.1} parent=1 // pred_region
      _
    $region17: #{tpu_custom_call.1} parent=1 // pred_fallthru
      _
    %v18 = vld [vmem:[%s0] sm:$0xff]
    %v19 = vld [vmem:[%s1] sm:$0xff]
    %v20 = vld [vmem:[%s1 + $0x8] sm:$0xff]
    %v21 = vld [vmem:[%s2] sm:$0xff]
    %v22 = vld [vmem:[%s2 + $0x8] sm:$0xff]
    %v23 = vld [vmem:[%s3] sm:$0xff]
    %v24 = vld [vmem:[%s3 + $0x8] sm:$0xff]
    %26 = vset.pattern.permute.xlu0 0
    %27 = vperm.xlu0 %26, %v21
    %v28 = vpop.permute.xlu0 %27
    %31 = vset.pattern.permute.xlu0 0
    %32 = vperm.xlu0 %31, %v22
    %v33 = vpop.permute.xlu0 %32
    %vm35 = vcmask 261120
    %v37 = vsel %vm35, %v19, 0
    %v40 = vsel %vm35, %v20, 0
    %v43 = vsel %vm35, %v18, 0
    %45 = vmatprep.subr.mxu0 0.0
    %46 = vmatpush1.xpose.msra.mxu0 0.0
    %47 = vmatprep.subr.mxu0 0.0
    %48 = vmatpush1.xpose.msra.mxu0 0.0
    %49 = vmatprep.subr.mxu0 0.0
    %50 = vmatpush1.xpose.msra.mxu0 0.0
    %51 = vmatprep.subr.mxu0 0.0
    %52 = vmatpush1.xpose.msra.mxu0 0.0
    %53 = vmatprep.subr.mxu0 0.0
    %54 = vmatpush1.xpose.msra.mxu0 0.0
    %55 = vmatprep.subr.mxu0 0.0
    %56 = vmatpush1.xpose.msra.mxu0 0.0
    %57 = vmatprep.subr.mxu0 0.0
    %58 = vmatpush1.xpose.msra.mxu0 0.0
    %59 = vmatprep.subr.mxu0 0.0
    %60 = vmatpush1.xpose.msra.mxu0 0.0
    %61 = vmatprep.subr.mxu0 0.0
    %62 = vmatpush1.xpose.msra.mxu0 0.0
    %63 = vmatprep.subr.mxu0 0.0
    %64 = vmatpush1.xpose.msra.mxu0 0.0
    %65 = vmatprep.subr.mxu0 0.0
    %66 = vmatpush1.xpose.msra.mxu0 0.0
    %67 = vmatprep.subr.mxu0 0.0
    %68 = vmatpush1.xpose.msra.mxu0 0.0
    %69 = vmatprep.subr.mxu0 0.0
    %70 = vmatpush1.xpose.msra.mxu0 0.0
    %71 = vmatprep.subr.mxu0 0.0
    %72 = vmatpush1.xpose.msra.mxu0 0.0
    %73 = vmatprep.subr.mxu0 0.0
    %74 = vmatpush1.xpose.msra.mxu0 0.0
    %75 = vmatprep.subr.mxu0 0.0
    %76 = vmatpush1.xpose.msra.mxu0 %v43
    %77 = vmatprep.subr.mxu0 0.0
    %78 = vmatpush2.xpose.msra.mxu0 0.0
    %79 = vmatprep.subr.mxu0 0.0
    %80 = vmatpush2.xpose.msra.mxu0 0.0
    %81 = vmatprep.subr.mxu0 0.0
    %82 = vmatpush2.xpose.msra.mxu0 0.0
    %83 = vmatprep.subr.mxu0 0.0
    %84 = vmatpush2.xpose.msra.mxu0 0.0
    %85 = vmatprep.subr.mxu0 0.0
    %86 = vmatpush2.xpose.msra.mxu0 0.0
    %87 = vmatprep.subr.mxu0 0.0
    %88 = vmatpush2.xpose.msra.mxu0 0.0
    %89 = vmatprep.subr.mxu0 0.0
    %90 = vmatpush2.xpose.msra.mxu0 0.0
    %91 = vmatprep.subr.mxu0 0.0
    %92 = vmatpush2.xpose.msra.mxu0 0.0
    %93 = vmatprep.subr.mxu0 0.0
    %94 = vmatpush2.xpose.msra.mxu0 0.0
    %95 = vmatprep.subr.mxu0 0.0
    %96 = vmatpush2.xpose.msra.mxu0 0.0
    %97 = vmatprep.subr.mxu0 0.0
    %98 = vmatpush2.xpose.msra.mxu0 0.0
    %99 = vmatprep.subr.mxu0 0.0
    %100 = vmatpush2.xpose.msra.mxu0 0.0
    %101 = vmatprep.subr.mxu0 0.0
    %102 = vmatpush2.xpose.msra.mxu0 0.0
    %103 = vmatprep.subr.mxu0 0.0
    %104 = vmatpush2.xpose.msra.mxu0 0.0
    %105 = vmatprep.subr.mxu0 0.0
    %106 = vmatpush2.xpose.msra.mxu0 0.0
    %107 = vmatprep.subr.mxu0 0.0
    %108 = vmatpush2.xpose.msra.mxu0 0.0
    %109 = vmatprep.mubr.f32.mxu0 0.0
    %110 = vmatmul.mubr.f32.gmra.mxu0 %v37
    %v111 = vpop.f32.mrf.mxu0
    %v112 = vadd.f32 %v28, %v111
    %v113 = vpop.f32.mrf.mxu0
    %114 = vmatprep.mubr.f32.mxu0 0.0
    %115 = vmatmul.mubr.f32.gmra.mxu0 %v40
    %v116 = vpop.f32.mrf.mxu0
    %v117 = vadd.f32 %v33, %v116
    %v118 = vpop.f32.mrf.mxu0
    %119 = vdwg.mxu0
    %v120 = vxor.u32 %v112, 2147483648
    %v121 = vxor.u32 %v117, 2147483648
    %v122 = vmul.f32 %v120, 1.442695
    %v123 = vpow.pop %v122
    %v124 = vmul.f32 %v121, 1.442695
    %v125 = vpow.pop %v124
    %v126 = vadd.f32 %v123, 1.0
    %v127 = vadd.f32 %v125, 1.0
    %v128 = vrcp.pop %v126
    %v129 = vmul.f32 1.0, %v128
    %v130 = vrcp.pop %v127
    %v131 = vmul.f32 1.0, %v130
    %vm132 = vcmask 64512
    %v133 = vsel %vm132, %v129, 0.0
    %v134 = vsel %vm132, %v131, 0.0
    %v135 = vadd.f32 %v133, %v134
    %v136 = vrot.slane %v135, 4
    %v137 = vadd.f32 %v135, %v136
    %v138 = vrot.slane %v137, 2
    %v139 = vadd.f32 %v137, %v138
    %v140 = vrot.slane %v139, 1
    %v141 = vadd.f32 %v139, %v140
    %v142 = vrcp.pop 16.0
    %v143 = vmul.f32 %v141, %v142
    %v144 = vsub.f32 %v129, %v143
    %v145 = vsub.f32 %v131, %v143
    %v146 = vmul.f32 %v144, %v144
    %v147 = vmul.f32 %v145, %v145
    %v148 = vsel %vm132, %v146, 0.0
    %v149 = vsel %vm132, %v147, 0.0
    %v150 = vadd.f32 %v148, %v149
    %v151 = vrot.slane %v150, 4
    %v152 = vadd.f32 %v150, %v151
    %v153 = vrot.slane %v152, 2
    %v154 = vadd.f32 %v152, %v153
    %v155 = vrot.slane %v154, 1
    %v156 = vadd.f32 %v154, %v155
    %v157 = vrcp.pop 15.0
    %v158 = vmul.f32 %v156, %v157
    %v159 = vsub.f32 1.0, %v129
    %v160 = vsub.f32 1.0, %v131
    %v161 = vmul.f32 %v129, %v159
    %v162 = vmul.f32 %v131, %v160
    %164 = vset.pattern.permute.xlu0 0
    %165 = vperm.xlu0 %164, %v23
    %v166 = vpop.permute.xlu0 %165
    %169 = vset.pattern.permute.xlu0 0
    %170 = vperm.xlu0 %169, %v24
    %v171 = vpop.permute.xlu0 %170
    %v173 = vmul.f32 %v161, %v166
    %v174 = vmul.f32 %v162, %v171
    %v175 = vsel %vm132, %v173, 0.0
    %v176 = vsel %vm132, %v174, 0.0
    %v177 = vadd.f32 %v175, %v176
    %v178 = vrot.slane %v177, 4
    %v179 = vadd.f32 %v177, %v178
    %v180 = vrot.slane %v179, 2
    %v181 = vadd.f32 %v179, %v180
    %v182 = vrot.slane %v181, 1
    %v183 = vadd.f32 %v181, %v182
    %v184 = vmul.f32 %v183, %v142
    %v185 = vmul.f32 %v184, %v184
    %v186 = vadd.f32 %v158, %v185
    %v187 = vrsqrt.pop %v186
    %v188 = vmul.f32 %v186, %v187
    %vm189 = vcmp.eq.f32.partialorder %v186, inf
    %v190 = vsel %vm189, %v186, %v188
    %vm191 = vcmp.eq.f32.partialorder %v186, 0.0
    %v192 = vand.u32 %v186, 2147483648
    %v193 = vsel %vm191, %v192, %v190
    %vm194 = vcmask 1040384
    %v195 = vsel %vm194, %v143, %v193
    %vm196 = vcmask 58368
    %197 = vst.msk [vmem:[#allocation2] sm:$0x3] %vm196, %v195
    // Predicated region
    $region18: #{tpu_custom_call.1} parent=1 // pred_check
      _
    $region19: #{tpu_custom_call.1} parent=1 // pred_check_branch
      %199 = sbr.rel (0) target = $region21
    $region20: #{tpu_custom_call.1} parent=1 // pred_region
      %s201 = ssub.s32 32, 32
      %202 = vsyncadd [#allocation3], %s201
      %s204 = sshll.u32 [#allocation2], 4
      %s205 = int_to_ptr.vmem [resolvable:$true] %s204
      %207 = dma.vmem_to_hbm [thread:$0]  %s205, 32, %s4, [#allocation3]
    $region21: #{tpu_custom_call.1} parent=1 // pred_fallthru
      _
    // Predicated region
    $region22: #{tpu_custom_call.1} parent=1 // pred_check
      _
    $region23: #{tpu_custom_call.1} parent=1 // pred_check_branch
      %209 = sbr.rel (0) target = $region25
    $region24: #{tpu_custom_call.1} parent=1 // pred_region
      %210 = dma.done [#allocation3], 32
    $region25: #{tpu_custom_call.1} parent=1 // pred_fallthru
      _
    %211 = vsyncpa [#allocation3], 1

</llo_original>
